<compile_context>
chip_gen: v7x
topology: tpu7x:2x2x1
jax: 0.10.0
libtpu: 0.0.40
codegen_flags: <defaults>
</compile_context>

<pallas_src>
import jax
import jax.numpy as jnp
from jax.experimental import pallas as pl
from jax.experimental.pallas import tpu as pltpu

ATT_DIM = 256
SCALE = ATT_DIM ** (-0.5)


def _make_attention_kernel(t_valid: int, t_stride: int):
    """Returns a kernel closed over the (static) valid / padded sequence lengths."""

    def kernel(x_ref, w_ref, v_ref, o_ref):
        # x_ref: (Bt, Tp, C) f32   w_ref: (C, 256) bf16   v_ref: (1, 256) f32 (scale folded)
        # o_ref: (Bt, C) f32
        bt, tp, c = x_ref.shape
        rows = bt * tp

        x = x_ref[...]                                   # (Bt, Tp, C) f32
        x2d = x.reshape(rows, c)                         # free merge (Tp % 8 == 0)

        # ---- scores: one big MXU matmul, bf16 inputs, f32 accumulate ----
        e = jnp.tanh(
            jnp.dot(x2d.astype(jnp.bfloat16), w_ref[...],
                    preferred_element_type=jnp.float32))            # (rows, 256) f32

        # row-wise dot with (scale * V): elementwise mul + lane reduce (keeps MXU free)
        s = jnp.sum(e * v_ref[...], axis=-1, keepdims=True)         # (rows, 1)

        # ---- softmax numerator (global-max shift; identical math, overflow-safe) ----
        m = jnp.max(s, axis=0, keepdims=True)                       # (1, 1)
        p = jnp.exp(s - m)                                          # (rows, 1)

        # ---- group-selection matrix: G[b, r] = 1 iff row r is a *valid* row of batch b
        row_b = jax.lax.broadcasted_iota(jnp.int32, (bt, rows), 0)
        col_r = jax.lax.broadcasted_iota(jnp.int32, (bt, rows), 1)
        start = row_b * t_stride
        G = jnp.where((col_r >= start) & (col_r < start + t_valid),
                      jnp.float32(1.0), jnp.float32(0.0))           # (Bt, rows)

        # numerator (weighted sum over T) and per-batch denominator, both on the MXU;
        # f32 matmuls use the multi-pass MXU decomposition (≈ f32 accuracy).
        num = jnp.dot(G, p * x2d, preferred_element_type=jnp.float32)   # (Bt, C)
        den = jnp.dot(G, p, preferred_element_type=jnp.float32)         # (Bt, 1)

        # lane-dense (Bt, 256) output slab in a single store
        o_ref[...] = num / den

    return kernel


def _choose_batch_tile(B: int, T: int, target_rows: int) -> int:
    """Largest divisor Bt of B with Bt*T <= target_rows.

    Keeps the (Bt, 256) output block sublane-aligned (Bt % 8 == 0) unless Bt == B, and
    prefers >= 2 grid steps so both v7x TensorCores get work.
    """
    divisors = [d for d in range(1, B + 1) if B % d == 0]
    legal = [d for d in divisors if d % 8 == 0 or d == B]
    ok = [d for d in legal if d * T <= target_rows]
    if not ok:
        return min(legal)
    bt = max(ok)
    if bt == B and B > 1:
        smaller = [d for d in ok if d < B]
        if smaller:
            bt = max(smaller)
    return bt


def attention_forward(x, W, V, *, target_rows: int = 512):
    """x: (B, 256, T); W: (256, 256); V: (256, 1).  Returns (B, 256) float32."""
    B, C, T = x.shape
    assert C == ATT_DIM and W.shape == (ATT_DIM, ATT_DIM) and V.shape == (ATT_DIM, 1)

    # (B, C, T) -> (B, T, C): channels-last so C=256 sits on the 128-lane axis.
    # allow_input_fusion=[0] below lets XLA fuse this transpose into the kernel's input
    # pipeline where supported, instead of a separate HBM round trip.
    x_t = jnp.transpose(x, (0, 2, 1)).astype(jnp.float32)

    # Pad T to a sublane multiple so the in-kernel (Bt, Tp, C) -> (Bt*Tp, C) merge is a
    # free re-interpretation; padded rows are masked out of the softmax by G.
    t_pad = ((T + 7) // 8) * 8
    if t_pad != T:
        x_t = jnp.pad(x_t, ((0, 0), (0, t_pad - T), (0, 0)))

    w_bf16 = W.astype(jnp.bfloat16)                               # bf16 MXU weights
    v_row = (V.astype(jnp.float32) * SCALE).reshape(1, ATT_DIM)   # fold scale into V once

    bt = _choose_batch_tile(B, t_pad, target_rows)
    grid = (B // bt,)

    out = pl.pallas_call(
        _make_attention_kernel(T, t_pad),
        out_shape=jax.ShapeDtypeStruct((B, ATT_DIM), jnp.float32),
        grid=grid,
        in_specs=[
            pl.BlockSpec((bt, t_pad, ATT_DIM), lambda i: (i, 0, 0)),   # x tile
            pl.BlockSpec((ATT_DIM, ATT_DIM), lambda i: (0, 0)),        # W (bf16, resident)
            pl.BlockSpec((1, ATT_DIM), lambda i: (0, 0)),              # scale * V row
        ],
        out_specs=pl.BlockSpec((bt, ATT_DIM), lambda i: (i, 0)),
        compiler_params=pltpu.CompilerParams(
            dimension_semantics=("parallel",),   # batch axis shards across TensorCores
            allow_input_fusion=[0],
        ),
    )(x_t, w_bf16, v_row)

    return out


def _reference_forward(x, W, V):
    # Mirrors the torch module in f32, except the first matmul uses bf16 inputs with f32
    # accumulation to match the kernel's MXU precision choice.
    xt = jnp.transpose(x, (0, 2, 1)).astype(jnp.float32)
    e = jnp.tanh(jnp.matmul(xt.astype(jnp.bfloat16), W.astype(jnp.bfloat16),
                            preferred_element_type=jnp.float32))
    s = jnp.matmul(e, V.astype(jnp.float32)) * SCALE
    n1 = jnp.exp(s)
    n2 = jnp.sum(n1, axis=1, keepdims=True)
    alpha = n1 / n2
    return jnp.sum(alpha * xt, axis=1)


if __name__ == "__main__":
    key = jax.random.PRNGKey(0)
    kx, kw, kv = jax.random.split(key, 3)

    B, C, T = 16, ATT_DIM, 16            # C=256 is fixed by the module
    x = jax.random.normal(kx, (B, C, T), dtype=jnp.float32)
    W = jax.random.normal(kw, (ATT_DIM, ATT_DIM), dtype=jnp.float32)
    V = jax.random.normal(kv, (ATT_DIM, 1), dtype=jnp.float32)

    out = jax.block_until_ready(attention_forward(x, W, V))
    ref = _reference_forward(x, W, V)

    assert out.shape == (B, ATT_DIM)
    # Tolerance covers MXU-vs-XLA accumulation-order differences and the f32 (multi-pass
    # bf16) MXU matmuls used for the grouped reduction; observed differences are << this.
    assert jnp.allclose(out, ref, rtol=1e-2, atol=1e-2), float(jnp.max(jnp.abs(out - ref)))

    print("KERNEL_OK")
</pallas_src>

<mosaic_0001>
module attributes {stable_mosaic.version = 11 : i64} {
  func.func @kernel(%arg0: i32, %arg1: memref<8x16x256xf32, #tpu.memory_space<vmem>>, %arg2: memref<256x256xbf16, #tpu.memory_space<vmem>>, %arg3: memref<1x256xf32, #tpu.memory_space<vmem>>, %arg4: memref<8x256xf32, #tpu.memory_space<vmem>>) attributes {dimension_semantics = [#tpu.dimension_semantics<parallel>], iteration_bounds = array<i64: 2>, scalar_prefetch = 0 : i64, scratch_operands = 0 : i64, tpu.core_type = #tpu.core_type<tc>, window_params = [{transform_indices = @transform_0, window_bounds = array<i64: 8, 16, 256>}, {pipeline_mode = #tpu.pipeline_mode<synchronous>, transform_indices = @transform_1, window_bounds = array<i64: 256, 256>}, {pipeline_mode = #tpu.pipeline_mode<synchronous>, transform_indices = @transform_2, window_bounds = array<i64: 1, 256>}, {transform_indices = @transform_3, window_bounds = array<i64: 8, 256>}]} {
    %c0 = arith.constant 0 : index
    %c0_0 = arith.constant 0 : index
    %c0_1 = arith.constant 0 : index
    %0 = vector.load %arg1[%c0, %c0_0, %c0_1] : memref<8x16x256xf32, #tpu.memory_space<vmem>>, vector<8x16x256xf32>
    %1 = vector.shape_cast %0 : vector<8x16x256xf32> to vector<128x256xf32>
    %2 = arith.truncf %1 : vector<128x256xf32> to vector<128x256xbf16>
    %c0_2 = arith.constant 0 : index
    %c0_3 = arith.constant 0 : index
    %3 = vector.load %arg2[%c0_2, %c0_3] : memref<256x256xbf16, #tpu.memory_space<vmem>>, vector<256x256xbf16>
    %cst = arith.constant dense<0.000000e+00> : vector<128x256xf32>
    %4 = tpu.matmul %2, %3, %cst {dimension_numbers = #tpu.dot_dimension_numbers<[1], [0], [0], [1], [0, 0, 1, 1], [], []>} : vector<128x256xbf16>, vector<256x256xbf16>, vector<128x256xf32> -> vector<128x256xf32>
    %5 = math.tanh %4 : vector<128x256xf32>
    %c0_4 = arith.constant 0 : index
    %c0_5 = arith.constant 0 : index
    %6 = vector.load %arg3[%c0_4, %c0_5] : memref<1x256xf32, #tpu.memory_space<vmem>>, vector<1x256xf32>
    %7 = vector.broadcast %6 : vector<1x256xf32> to vector<128x256xf32>
    %8 = arith.mulf %5, %7 : vector<128x256xf32>
    %cst_6 = arith.constant dense<0.000000e+00> : vector<128xf32>
    %9 = vector.multi_reduction <add>, %8, %cst_6 [1] : vector<128x256xf32> to vector<128xf32>
    %10 = vector.shape_cast %9 : vector<128xf32> to vector<128x1xf32>
    %cst_7 = arith.constant dense<0xFF800000> : vector<1xf32>
    %11 = vector.multi_reduction <maximumf>, %10, %cst_7 [0] : vector<128x1xf32> to vector<1xf32>
    %12 = vector.shape_cast %11 : vector<1xf32> to vector<1x1xf32>
    %13 = vector.broadcast %12 : vector<1x1xf32> to vector<128x1xf32>
    %14 = arith.subf %10, %13 : vector<128x1xf32>
    %15 = math.exp %14 : vector<128x1xf32>
    %16 = tpu.iota {dimensions = array<i32: 0>} : vector<8x128xi32>
    %17 = tpu.iota {dimensions = array<i32: 1>} : vector<8x128xi32>
    %c16_i32 = arith.constant 16 : i32
    %18 = vector.broadcast %c16_i32 : i32 to vector<8x128xi32>
    %19 = arith.muli %16, %18 : vector<8x128xi32>
    %20 = arith.cmpi sge, %17, %19 : vector<8x128xi32>
    %c16_i32_8 = arith.constant 16 : i32
    %21 = vector.broadcast %c16_i32_8 : i32 to vector<8x128xi32>
    %22 = arith.addi %19, %21 : vector<8x128xi32>
    %23 = arith.cmpi slt, %17, %22 : vector<8x128xi32>
    %24 = arith.andi %20, %23 : vector<8x128xi1>
    %cst_9 = arith.constant 1.000000e+00 : f32
    %cst_10 = arith.constant 0.000000e+00 : f32
    %25 = vector.broadcast %cst_9 : f32 to vector<8x128xf32>
    %26 = vector.broadcast %cst_10 : f32 to vector<8x128xf32>
    %27 = arith.select %24, %25, %26 : vector<8x128xi1>, vector<8x128xf32>
    %28 = vector.broadcast %15 : vector<128x1xf32> to vector<128x256xf32>
    %29 = arith.mulf %28, %1 : vector<128x256xf32>
    %cst_11 = arith.constant dense<0.000000e+00> : vector<8x256xf32>
    %30 = tpu.matmul %27, %29, %cst_11 {dimension_numbers = #tpu.dot_dimension_numbers<[1], [0], [0], [1], [0, 0, 1, 1], [], []>} : vector<8x128xf32>, vector<128x256xf32>, vector<8x256xf32> -> vector<8x256xf32>
    %cst_12 = arith.constant dense<0.000000e+00> : vector<8x1xf32>
    %31 = tpu.matmul %27, %15, %cst_12 {dimension_numbers = #tpu.dot_dimension_numbers<[1], [0], [0], [1], [0, 0, 1, 1], [], []>} : vector<8x128xf32>, vector<128x1xf32>, vector<8x1xf32> -> vector<8x1xf32>
    %32 = vector.broadcast %31 : vector<8x1xf32> to vector<8x256xf32>
    %33 = arith.divf %30, %32 : vector<8x256xf32>
    %c0_13 = arith.constant 0 : index
    %c0_14 = arith.constant 0 : index
    %34 = vector.load %arg4[%c0_13, %c0_14] : memref<8x256xf32, #tpu.memory_space<vmem>>, vector<8x256xf32>
    tpu.vector_store %arg4[%c0_13, %c0_14], %33 {strides = array<i32>} : memref<8x256xf32, #tpu.memory_space<vmem>>, vector<8x256xf32>,
    return
  }
  func.func @transform_0(%arg0: i32) -> (i32, i32, i32) {
    %c0_i32 = arith.constant 0 : i32
    %c0_i32_0 = arith.constant 0 : i32
    %c0_i32_1 = arith.constant 0 : i32
    return %arg0, %c0_i32, %c0_i32_0 : i32, i32, i32
  }
  func.func @transform_1(%arg0: i32) -> (i32, i32) {
    %c0_i32 = arith.constant 0 : i32
    %c0_i32_0 = arith.constant 0 : i32
    %c0_i32_1 = arith.constant 0 : i32
    return %c0_i32, %c0_i32_0 : i32, i32
  }
  func.func @transform_2(%arg0: i32) -> (i32, i32) {
    %c0_i32 = arith.constant 0 : i32
    %c0_i32_0 = arith.constant 0 : i32
    %c0_i32_1 = arith.constant 0 : i32
    return %c0_i32, %c0_i32_0 : i32, i32
  }
  func.func @transform_3(%arg0: i32) -> (i32, i32) {
    %c0_i32 = arith.constant 0 : i32
    %c0_i32_0 = arith.constant 0 : i32
    return %arg0, %c0_i32 : i32, i32
  }
}

</mosaic_0001>

<llo_original>
// kernel: tpu_custom_call.1
$region0: #{tpu_custom_call.1}
  #allocation0 [shape = 'u32[]', space=smem, size = 0x4, offset = 0x4, fixed_abs, tag = 'smem constant byte address 0x4 - core index']
  #allocation1 [shape = 'u32[144,128]{1,0:T(1,128)}', space=vmem, size = 0x12000, scoped, tag = 'internal scratch']
  %s0 = inlined_call_operand.hbm [shape: f32[16,16,256], index: 0, kind: input, shape index: {}]
  %s1 = inlined_call_operand.hbm [shape: bf16[256,256], index: 1, kind: input, shape index: {}]
  %s2 = inlined_call_operand.vmem [shape: f32[1,256], index: 2, kind: input, shape index: {}]
  %s3 = inlined_call_operand.hbm [shape: f32[16,256], index: 3, kind: output, shape index: {}]
  %s4 = sld [smem:[#allocation0]]
  $region53: #{tpu_custom_call.1} parent=0
    _
  %s6 = ssub.s32 1, %s4
  %s7 = scalar_select 0, %s6, %s4
  $region1: #{tpu_custom_call.1} parent=0
    #allocation2 [shape = 'u8[262144]{0}', space=vmem, size = 0x40000, scoped, tag = 'input window, operand 0']
    #allocation3 [shape = 's32[2]{0}', space=sflag, size = 0x8, scoped, tag = 'scoped memory for tpu_custom_call.1']
    #allocation4 [shape = 's32[2]{0}', space=sflag, size = 0x8, scoped, tag = 'scoped memory for tpu_custom_call.1']
    #allocation5 [shape = 'u8[131072]{0}', space=vmem, size = 0x20000, scoped, tag = 'input window, operand 1, single buffered']
    #allocation6 [shape = 's32[1]{0}', space=sflag, size = 0x4, scoped, tag = 'scoped memory for tpu_custom_call.1']
    #allocation7 [shape = 'u8[16384]{0}', space=vmem, size = 0x4000, scoped, tag = 'output window, operand 0']
    %8 = vsyncpa [#allocation3], 0
    %s9 = scalar_lea.sflag [#allocation3], 1
    %10 = vsyncpa %s9, 0
    %11 = vsyncpa [#allocation6], 0
    %12 = vsyncpa [#allocation4], 0
    %s13 = scalar_lea.sflag [#allocation4], 1
    %14 = vsyncpa %s13, 0
    loop: start=0, step=1, limit=4
    $region2: #{tpu_custom_call.1} parent=1 // loop_pre_header
      _
    $region3: #{tpu_custom_call.1} parent=1 // loop_header
      %s16 = sphi 0, %s20
      %p17 = scmp.ge.s32.totalorder %s16, 4
      %s26 = sphi 0, %s28
      %s29 = sphi 0, %s26
      %s30 = sphi 0, %s29
      %s46 = sphi 0, %s30
      %s50 = sphi 0, %s50
      %s52 = sphi 0, %s50
      %s53 = sphi 0, %s52
      %s67 = sphi 0, %s53
      %s71 = sphi 0, %s71
      %s73 = sphi 0, %s71
      %s74 = sphi 0, %s73
      %s88 = sphi 0, %s74
      %s94 = sphi 0, %s96
      %s97 = sphi 0, %s94
      %s98 = sphi 0, %s97
      %s114 = sphi 0, %s98
    $region4: #{tpu_custom_call.1} parent=1 // loop_header_branch
      %19 = sbr.rel (%p17) target = $region8
    $region5: #{tpu_custom_call.1} parent=1 // loop_body
      %s21 = ssub.s32 %s16, 1
      %s22 = ssub.s32 %s16, 2
      %s23 = sadd.s32 %s16, 1
      %s24 = ssub.s32 %s16, %s23
      %p25 = scmp.eq.s32.totalorder %s24, 0
      %s27 = sadd.s32 %s26, 1
      %s28 = scalar_select %p25, %s26, %s27
      %p31 = pneg %p25
      %p32 = scmp.eq.s32.totalorder %s16, 1
      %p33 = por %p31, %p32
      %p34 = scmp.ne.s32.totalorder %s26, %s29
      %p35 = scmp.eq.s32.totalorder %s16, 0
      %p36 = por %p34, %p35
      %p37 = scmp.ne.s32.totalorder %s26, %s29
      %p38 = scmp.eq.s32.totalorder %s21, 1
      %p39 = por %p37, %p38
      %p40 = scmp.ne.s32.totalorder %s29, %s30
      %p41 = scmp.eq.s32.totalorder %s21, 0
      %p42 = por %p40, %p41
      %p43 = scmp.ne.s32.totalorder %s29, %s30
      %p44 = scmp.eq.s32.totalorder %s22, 1
      %p45 = por %p43, %p44
      %p47 = scmp.ne.s32.totalorder %s30, %s46
      %p48 = scmp.eq.s32.totalorder %s22, 0
      %p49 = por %p47, %p48
      %s51 = sadd.s32 %s50, 1
      %p54 = scmp.eq.s32.totalorder %s16, 1
      %p55 = scmp.ne.s32.totalorder %s50, %s52
      %p56 = scmp.eq.s32.totalorder %s16, 0
      %p57 = por %p55, %p56
      %p58 = scmp.ne.s32.totalorder %s50, %s52
      %p59 = scmp.eq.s32.totalorder %s21, 1
      %p60 = por %p58, %p59
      %p61 = scmp.ne.s32.totalorder %s52, %s53
      %p62 = scmp.eq.s32.totalorder %s21, 0
      %p63 = por %p61, %p62
      %p64 = scmp.ne.s32.totalorder %s52, %s53
      %p65 = scmp.eq.s32.totalorder %s22, 1
      %p66 = por %p64, %p65
      %p68 = scmp.ne.s32.totalorder %s53, %s67
      %p69 = scmp.eq.s32.totalorder %s22, 0
      %p70 = por %p68, %p69
      %s72 = sadd.s32 %s71, 1
      %p75 = scmp.eq.s32.totalorder %s16, 1
      %p76 = scmp.ne.s32.totalorder %s71, %s73
      %p77 = scmp.eq.s32.totalorder %s16, 0
      %p78 = por %p76, %p77
      %p79 = scmp.ne.s32.totalorder %s71, %s73
      %p80 = scmp.eq.s32.totalorder %s21, 1
      %p81 = por %p79, %p80
      %p82 = scmp.ne.s32.totalorder %s73, %s74
      %p83 = scmp.eq.s32.totalorder %s21, 0
      %p84 = por %p82, %p83
      %p85 = scmp.ne.s32.totalorder %s73, %s74
      %p86 = scmp.eq.s32.totalorder %s22, 1
      %p87 = por %p85, %p86
      %p89 = scmp.ne.s32.totalorder %s74, %s88
      %p90 = scmp.eq.s32.totalorder %s22, 0
      %p91 = por %p89, %p90
      %s92 = ssub.s32 %s16, %s23
      %p93 = scmp.eq.s32.totalorder %s92, 0
      %s95 = sadd.s32 %s94, 1
      %s96 = scalar_select %p93, %s94, %s95
      %p99 = pneg %p93
      %p100 = scmp.eq.s32.totalorder %s16, 1
      %p101 = por %p99, %p100
      %p102 = scmp.ne.s32.totalorder %s94, %s97
      %p103 = scmp.eq.s32.totalorder %s16, 0
      %p104 = por %p102, %p103
      %p105 = scmp.ne.s32.totalorder %s94, %s97
      %p106 = scmp.eq.s32.totalorder %s21, 1
      %p107 = por %p105, %p106
      %p108 = scmp.ne.s32.totalorder %s97, %s98
      %p109 = scmp.eq.s32.totalorder %s21, 0
      %p110 = por %p108, %p109
      %p111 = scmp.ne.s32.totalorder %s97, %s98
      %p112 = scmp.eq.s32.totalorder %s22, 1
      %p113 = por %p111, %p112
      %p115 = scmp.ne.s32.totalorder %s98, %s114
      %p116 = scmp.eq.s32.totalorder %s22, 0
      %p117 = por %p115, %p116
      %p118 = scmp.le.s32.totalorder 1, %s16
      %p119 = scmp.lt.s32.totalorder %s16, 3
      %p120 = pnand %p118, %p119
      %p121 = pneg %p120
      // Predicated region
      $region9: #{tpu_custom_call.1} parent=5 // pred_check
        _
      $region10: #{tpu_custom_call.1} parent=5 // pred_check_branch
        %123 = sbr.rel (%p120) target = $region12
      $region11: #{tpu_custom_call.1} parent=5 // pred_region
        %s124 = ssub.s32 %s16, 1
        // Predicated region
        $region13: #{tpu_custom_call.1} parent=11 // pred_check
          %p125 = pneg %p63
        $region14: #{tpu_custom_call.1} parent=11 // pred_check_branch
          %127 = sbr.rel (%p125) target = $region16
        $region15: #{tpu_custom_call.1} parent=11 // pred_region
          %s129 = ssub.s32 4096, 4096
          %130 = vsyncadd [#allocation6], %s129
          %s131 = sshll.u32 [#allocation5], 4
          %s132 = int_to_ptr.vmem [resolvable:$true] %s131
          %137 = dma.hbm_to_vmem [thread:$0]  %s1, 4096, %s132, [#allocation6], 128, 128, 8
        $region16: #{tpu_custom_call.1} parent=11 // pred_fallthru
          _
        // Predicated region
        $region17: #{tpu_custom_call.1} parent=11 // pred_check
          %p138 = pneg %p84
        $region18: #{tpu_custom_call.1} parent=11 // pred_check_branch
          %140 = sbr.rel (%p138) target = $region20
        $region19: #{tpu_custom_call.1} parent=11 // pred_region
          _
        $region20: #{tpu_custom_call.1} parent=11 // pred_fallthru
          _
      $region12: #{tpu_custom_call.1} parent=5 // pred_fallthru
        _
      %p141 = scmp.lt.s32.totalorder %s16, 2
      // Predicated region
      $region21: #{tpu_custom_call.1} parent=5 // pred_check
        %p142 = pneg %p141
      $region22: #{tpu_custom_call.1} parent=5 // pred_check_branch
        %144 = sbr.rel (%p142) target = $region24
      $region23: #{tpu_custom_call.1} parent=5 // pred_region
        // Predicated region
        $region25: #{tpu_custom_call.1} parent=23 // pred_check
          %p145 = pneg %p36
        $region26: #{tpu_custom_call.1} parent=23 // pred_check_branch
          %147 = sbr.rel (%p145) target = $region28
        $region27: #{tpu_custom_call.1} parent=23 // pred_region
          %s148 = sand.u32 %s26, 1
          %s149 = scalar_lea.sflag [#allocation3], %s148
          %s150 = sand.u32 %s26, 1
          %s151 = smul.addr %s150, 256
          %s152 = scalar_lea.vmem [#allocation2], %s151
          %s153 = smul.u32 8, %s16
          %s155 = ssub.s32 4096, 4096
          %156 = vsyncadd %s149, %s155
          %s157 = smul.addr %s153, 4
          %s158 = smul.addr %s157, 128
          %s159 = scalar_lea.hbm %s0, %s158
          %s160 = sshll.u32 %s152, 4
          %s161 = int_to_ptr.vmem [resolvable:$true] %s160
          %166 = dma.hbm_to_vmem [thread:$0]  %s159, 4096, %s161, %s149, 256, 256, 16
        $region28: #{tpu_custom_call.1} parent=23 // pred_fallthru
          _
      $region24: #{tpu_custom_call.1} parent=5 // pred_fallthru
        _
      %p167 = scmp.le.s32.totalorder 1, %s16
      %p168 = scmp.lt.s32.totalorder %s16, 3
      %p169 = pnand %p167, %p168
      %p170 = pneg %p169
      // Predicated region
      $region29: #{tpu_custom_call.1} parent=5 // pred_check
        _
      $region30: #{tpu_custom_call.1} parent=5 // pred_check_branch
        %172 = sbr.rel (%p169) target = $region32
      $region31: #{tpu_custom_call.1} parent=5 // pred_region
        %s173 = ssub.s32 %s16, 1
        %s174 = sand.u32 %s29, 1
        %s175 = scalar_lea.sflag [#allocation3], %s174
        %s176 = sand.u32 %s29, 1
        %s177 = smul.addr %s176, 256
        %s178 = scalar_lea.vmem [#allocation2], %s177
        // Predicated region
        $region33: #{tpu_custom_call.1} parent=31 // pred_check
          %p179 = pneg %p42
        $region34: #{tpu_custom_call.1} parent=31 // pred_check_branch
          %181 = sbr.rel (%p179) target = $region36
        $region35: #{tpu_custom_call.1} parent=31 // pred_region
          %182 = dma.done %s175, 4096
        $region36: #{tpu_custom_call.1} parent=31 // pred_fallthru
          _
        // Predicated region
        $region37: #{tpu_custom_call.1} parent=31 // pred_check
          %p183 = pneg %p63
        $region38: #{tpu_custom_call.1} parent=31 // pred_check_branch
          %185 = sbr.rel (%p183) target = $region40
        $region39: #{tpu_custom_call.1} parent=31 // pred_region
          %186 = dma.done [#allocation6], 4096
        $region40: #{tpu_custom_call.1} parent=31 // pred_fallthru
          _
        %s187 = sand.u32 %s29, 1
        %s188 = scalar_lea.sflag [#allocation3], %s187
        %s189 = sand.u32 %s29, 1
        %s190 = smul.addr %s189, 256
        %s191 = scalar_lea.vmem [#allocation2], %s190
        %p192 = pneg %p42
        %p193 = pneg %p39
        %p194 = pneg %p63
        %p195 = pneg %p60
        %p196 = pneg %p84
        %p197 = pneg %p81
        %p198 = pneg %p110
        %p199 = pneg %p107
        %s200 = sand.u32 %s97, 1
        %s201 = scalar_lea.sflag [#allocation4], %s200
        %s202 = sand.u32 %s97, 1
        %s203 = smul.addr %s202, 16
        %s204 = scalar_lea.vmem [#allocation7], %s203
        %s205 = smul.u32 8, %s21
        %v206 = vld [vmem:[%s178] sm:$0xff]
        %v207 = vld [vmem:[%s178 + $0x8] sm:$0xff]
        %v208 = vld [vmem:[%s178 + $0x10] sm:$0xff]
        %v209 = vld [vmem:[%s178 + $0x18] sm:$0xff]
        %v210 = vld [vmem:[%s178 + $0x20] sm:$0xff]
        %v211 = vld [vmem:[%s178 + $0x28] sm:$0xff]
        %v212 = vld [vmem:[%s178 + $0x30] sm:$0xff]
        %v213 = vld [vmem:[%s178 + $0x38] sm:$0xff]
        %v214 = vld [vmem:[%s178 + $0x40] sm:$0xff]
        %v215 = vld [vmem:[%s178 + $0x48] sm:$0xff]
        %v216 = vld [vmem:[%s178 + $0x50] sm:$0xff]
        %v217 = vld [vmem:[%s178 + $0x58] sm:$0xff]
        %v218 = vld [vmem:[%s178 + $0x60] sm:$0xff]
        %v219 = vld [vmem:[%s178 + $0x68] sm:$0xff]
        %v220 = vld [vmem:[%s178 + $0x70] sm:$0xff]
        %v221 = vld [vmem:[%s178 + $0x78] sm:$0xff]
        %v222 = vld [vmem:[%s178 + $0x80] sm:$0xff]
        %v223 = vld [vmem:[%s178 + $0x88] sm:$0xff]
        %v224 = vld [vmem:[%s178 + $0x90] sm:$0xff]
        %v225 = vld [vmem:[%s178 + $0x98] sm:$0xff]
        %v226 = vld [vmem:[%s178 + $0xa0] sm:$0xff]
        %v227 = vld [vmem:[%s178 + $0xa8] sm:$0xff]
        %v228 = vld [vmem:[%s178 + $0xb0] sm:$0xff]
        %v229 = vld [vmem:[%s178 + $0xb8] sm:$0xff]
        %v230 = vld [vmem:[%s178 + $0xc0] sm:$0xff]
        %v231 = vld [vmem:[%s178 + $0xc8] sm:$0xff]
        %v232 = vld [vmem:[%s178 + $0xd0] sm:$0xff]
        %v233 = vld [vmem:[%s178 + $0xd8] sm:$0xff]
        %v234 = vld [vmem:[%s178 + $0xe0] sm:$0xff]
        %v235 = vld [vmem:[%s178 + $0xe8] sm:$0xff]
        %v236 = vld [vmem:[%s178 + $0xf0] sm:$0xff]
        %v237 = vld [vmem:[%s178 + $0xf8] sm:$0xff]
        %v238 = vpack.c.bf16 %v208, %v206
        %v239 = vpack.c.bf16 %v209, %v207
        %v240 = vpack.c.bf16 %v212, %v210
        %v241 = vpack.c.bf16 %v213, %v211
        %v242 = vpack.c.bf16 %v216, %v214
        %v243 = vpack.c.bf16 %v217, %v215
        %v244 = vpack.c.bf16 %v220, %v218
        %v245 = vpack.c.bf16 %v221, %v219
        %v246 = vpack.c.bf16 %v224, %v222
        %v247 = vpack.c.bf16 %v225, %v223
        %v248 = vpack.c.bf16 %v228, %v226
        %v249 = vpack.c.bf16 %v229, %v227
        %v250 = vpack.c.bf16 %v232, %v230
        %v251 = vpack.c.bf16 %v233, %v231
        %v252 = vpack.c.bf16 %v236, %v234
        %v253 = vpack.c.bf16 %v237, %v235
        %v254 = vld [vmem:[#allocation5] sm:$0xff]
        %v255 = vld [vmem:[#allocation5 + $0x8] sm:$0xff]
        %v256 = vld [vmem:[#allocation5 + $0x10] sm:$0xff]
        %v257 = vld [vmem:[#allocation5 + $0x18] sm:$0xff]
        %v258 = vld [vmem:[#allocation5 + $0x20] sm:$0xff]
        %v259 = vld [vmem:[#allocation5 + $0x28] sm:$0xff]
        %v260 = vld [vmem:[#allocation5 + $0x30] sm:$0xff]
        %v261 = vld [vmem:[#allocation5 + $0x38] sm:$0xff]
        %v262 = vld [vmem:[#allocation5 + $0x40] sm:$0xff]
        %v263 = vld [vmem:[#allocation5 + $0x48] sm:$0xff]
        %v264 = vld [vmem:[#allocation5 + $0x50] sm:$0xff]
        %v265 = vld [vmem:[#allocation5 + $0x58] sm:$0xff]
        %v266 = vld [vmem:[#allocation5 + $0x60] sm:$0xff]
        %v267 = vld [vmem:[#allocation5 + $0x68] sm:$0xff]
        %v268 = vld [vmem:[#allocation5 + $0x70] sm:$0xff]
        %v269 = vld [vmem:[#allocation5 + $0x78] sm:$0xff]
        %v270 = vld [vmem:[#allocation5 + $0x80] sm:$0xff]
        %v271 = vld [vmem:[#allocation5 + $0x88] sm:$0xff]
        %v272 = vld [vmem:[#allocation5 + $0x90] sm:$0xff]
        %v273 = vld [vmem:[#allocation5 + $0x98] sm:$0xff]
        %v274 = vld [vmem:[#allocation5 + $0xa0] sm:$0xff]
        %v275 = vld [vmem:[#allocation5 + $0xa8] sm:$0xff]
        %v276 = vld [vmem:[#allocation5 + $0xb0] sm:$0xff]
        %v277 = vld [vmem:[#allocation5 + $0xb8] sm:$0xff]
        %v278 = vld [vmem:[#allocation5 + $0xc0] sm:$0xff]
        %v279 = vld [vmem:[#allocation5 + $0xc8] sm:$0xff]
        %v280 = vld [vmem:[#allocation5 + $0xd0] sm:$0xff]
        %v281 = vld [vmem:[#allocation5 + $0xd8] sm:$0xff]
        %v282 = vld [vmem:[#allocation5 + $0xe0] sm:$0xff]
        %v283 = vld [vmem:[#allocation5 + $0xe8] sm:$0xff]
        %v284 = vld [vmem:[#allocation5 + $0xf0] sm:$0xff]
        %v285 = vld [vmem:[#allocation5 + $0xf8] sm:$0xff]
        %v318 = vunpack.c.l.b16 %v254
        %v319 = vunpack.c.h.b16 %v254
        %v320 = vunpack.c.l.b16 %v255
        %v321 = vunpack.c.h.b16 %v255
        %v322 = vunpack.c.l.b16 %v256
        %v323 = vunpack.c.h.b16 %v256
        %v324 = vunpack.c.l.b16 %v257
        %v325 = vunpack.c.h.b16 %v257
        %v326 = vunpack.c.l.b16 %v258
        %v327 = vunpack.c.h.b16 %v258
        %v328 = vunpack.c.l.b16 %v259
        %v329 = vunpack.c.h.b16 %v259
        %v330 = vunpack.c.l.b16 %v260
        %v331 = vunpack.c.h.b16 %v260
        %v332 = vunpack.c.l.b16 %v261
        %v333 = vunpack.c.h.b16 %v261
        %v334 = vunpack.c.l.b16 %v262
        %v335 = vunpack.c.h.b16 %v262
        %v336 = vunpack.c.l.b16 %v263
        %v337 = vunpack.c.h.b16 %v263
        %v338 = vunpack.c.l.b16 %v264
        %v339 = vunpack.c.h.b16 %v264
        %v340 = vunpack.c.l.b16 %v265
        %v341 = vunpack.c.h.b16 %v265
        %v342 = vunpack.c.l.b16 %v266
        %v343 = vunpack.c.h.b16 %v266
        %v344 = vunpack.c.l.b16 %v267
        %v345 = vunpack.c.h.b16 %v267
        %v346 = vunpack.c.l.b16 %v268
        %v347 = vunpack.c.h.b16 %v268
        %v348 = vunpack.c.l.b16 %v269
        %v349 = vunpack.c.h.b16 %v269
        %v350 = vunpack.c.l.b16 %v270
        %v351 = vunpack.c.h.b16 %v270
        %v352 = vunpack.c.l.b16 %v271
        %v353 = vunpack.c.h.b16 %v271
        %v354 = vunpack.c.l.b16 %v272
        %v355 = vunpack.c.h.b16 %v272
        %v356 = vunpack.c.l.b16 %v273
        %v357 = vunpack.c.h.b16 %v273
        %v358 = vunpack.c.l.b16 %v274
        %v359 = vunpack.c.h.b16 %v274
        %v360 = vunpack.c.l.b16 %v275
        %v361 = vunpack.c.h.b16 %v275
        %v362 = vunpack.c.l.b16 %v276
        %v363 = vunpack.c.h.b16 %v276
        %v364 = vunpack.c.l.b16 %v277
        %v365 = vunpack.c.h.b16 %v277
        %v366 = vunpack.c.l.b16 %v278
        %v367 = vunpack.c.h.b16 %v278
        %v368 = vunpack.c.l.b16 %v279
        %v369 = vunpack.c.h.b16 %v279
        %v370 = vunpack.c.l.b16 %v280
        %v371 = vunpack.c.h.b16 %v280
        %v372 = vunpack.c.l.b16 %v281
        %v373 = vunpack.c.h.b16 %v281
        %v374 = vunpack.c.l.b16 %v282
        %v375 = vunpack.c.h.b16 %v282
        %v376 = vunpack.c.l.b16 %v283
        %v377 = vunpack.c.h.b16 %v283
        %v378 = vunpack.c.l.b16 %v284
        %v379 = vunpack.c.h.b16 %v284
        %v380 = vunpack.c.l.b16 %v285
        %v381 = vunpack.c.h.b16 %v285
        %v382 = vpack.c.b16 %v320, %v318
        %v383 = vpack.c.b16 %v321, %v319
        %v384 = vpack.c.b16 %v324, %v322
        %v385 = vpack.c.b16 %v325, %v323
        %v386 = vpack.c.b16 %v328, %v326
        %v387 = vpack.c.b16 %v329, %v327
        %v388 = vpack.c.b16 %v332, %v330
        %v389 = vpack.c.b16 %v333, %v331
        %v390 = vpack.c.b16 %v336, %v334
        %v391 = vpack.c.b16 %v337, %v335
        %v392 = vpack.c.b16 %v340, %v338
        %v393 = vpack.c.b16 %v341, %v339
        %v394 = vpack.c.b16 %v344, %v342
        %v395 = vpack.c.b16 %v345, %v343
        %v396 = vpack.c.b16 %v348, %v346
        %v397 = vpack.c.b16 %v349, %v347
        %v398 = vpack.c.b16 %v352, %v350
        %v399 = vpack.c.b16 %v353, %v351
        %v400 = vpack.c.b16 %v356, %v354
        %v401 = vpack.c.b16 %v357, %v355
        %v402 = vpack.c.b16 %v360, %v358
        %v403 = vpack.c.b16 %v361, %v359
        %v404 = vpack.c.b16 %v364, %v362
        %v405 = vpack.c.b16 %v365, %v363
        %v406 = vpack.c.b16 %v368, %v366
        %v407 = vpack.c.b16 %v369, %v367
        %v408 = vpack.c.b16 %v372, %v370
        %v409 = vpack.c.b16 %v373, %v371
        %v410 = vpack.c.b16 %v376, %v374
        %v411 = vpack.c.b16 %v377, %v375
        %v412 = vpack.c.b16 %v380, %v378
        %v413 = vpack.c.b16 %v381, %v379
        %446 = vmatprep.subr.bf16.mxu0 %v383
        %447 = vmatpush1.bf16.msra.mxu0 %v382
        %448 = vmatprep.subr.bf16.mxu0 %v385
        %449 = vmatpush1.bf16.msra.mxu0 %v384
        %450 = vmatprep.subr.bf16.mxu0 %v387
        %451 = vmatpush1.bf16.msra.mxu0 %v386
        %452 = vmatprep.subr.bf16.mxu0 %v389
        %453 = vmatpush1.bf16.msra.mxu0 %v388
        %454 = vmatprep.subr.bf16.mxu0 %v391
        %455 = vmatpush1.bf16.msra.mxu0 %v390
        %456 = vmatprep.subr.bf16.mxu0 %v393
        %457 = vmatpush1.bf16.msra.mxu0 %v392
        %458 = vmatprep.subr.bf16.mxu0 %v395
        %459 = vmatpush1.bf16.msra.mxu0 %v394
        %460 = vmatprep.subr.bf16.mxu0 %v397
        %461 = vmatpush1.bf16.msra.mxu0 %v396
        %462 = vmatprep.subr.bf16.mxu0 %v399
        %463 = vmatpush1.bf16.msra.mxu0 %v398
        %464 = vmatprep.subr.bf16.mxu0 %v401
        %465 = vmatpush1.bf16.msra.mxu0 %v400
        %466 = vmatprep.subr.bf16.mxu0 %v403
        %467 = vmatpush1.bf16.msra.mxu0 %v402
        %468 = vmatprep.subr.bf16.mxu0 %v405
        %469 = vmatpush1.bf16.msra.mxu0 %v404
        %470 = vmatprep.subr.bf16.mxu0 %v407
        %471 = vmatpush1.bf16.msra.mxu0 %v406
        %472 = vmatprep.subr.bf16.mxu0 %v409
        %473 = vmatpush1.bf16.msra.mxu0 %v408
        %474 = vmatprep.subr.bf16.mxu0 %v411
        %475 = vmatpush1.bf16.msra.mxu0 %v410
        %476 = vmatprep.subr.bf16.mxu0 %v413
        %477 = vmatpush1.bf16.msra.mxu0 %v412
        %478 = vmatprep.mubr.bf16.mxu0 %v239
        %479 = vmatmul.mubr.bf16.gmra.mrb[0].mxu0 %v238
        %v480 = vpop.f32.mrb[0].mxu0
        %v481 = vadd.f32 0.0, %v480
        %v482 = vpop.f32.mrb[0].mxu0
        %v483 = vadd.f32 0.0, %v482
        %v484 = vpop.f32.mrb[0].mxu0
        %v485 = vadd.f32 0.0, %v484
        %v486 = vpop.f32.mrb[0].mxu0
        %v487 = vadd.f32 0.0, %v486
        %488 = vmatprep.mubr.bf16.mxu0 %v241
        %489 = vmatmul.mubr.bf16.gmra.mrb[0].mxu0 %v240
        %v490 = vpop.f32.mrb[0].mxu0
        %v491 = vadd.f32 0.0, %v490
        %v492 = vpop.f32.mrb[0].mxu0
        %v493 = vadd.f32 0.0, %v492
        %v494 = vpop.f32.mrb[0].mxu0
        %v495 = vadd.f32 0.0, %v494
        %v496 = vpop.f32.mrb[0].mxu0
        %v497 = vadd.f32 0.0, %v496
        %498 = vmatprep.mubr.bf16.mxu0 %v243
        %499 = vmatmul.mubr.bf16.gmra.mrb[0].mxu0 %v242
        %v500 = vpop.f32.mrb[0].mxu0
        %v501 = vadd.f32 0.0, %v500
        %v502 = vpop.f32.mrb[0].mxu0
        %v503 = vadd.f32 0.0, %v502
        %v504 = vpop.f32.mrb[0].mxu0
        %v505 = vadd.f32 0.0, %v504
        %v506 = vpop.f32.mrb[0].mxu0
        %v507 = vadd.f32 0.0, %v506
        %508 = vmatprep.mubr.bf16.mxu0 %v245
        %509 = vmatmul.mubr.bf16.gmra.mrb[0].mxu0 %v244
        %v510 = vpop.f32.mrb[0].mxu0
        %v511 = vadd.f32 0.0, %v510
        %v512 = vpop.f32.mrb[0].mxu0
        %v513 = vadd.f32 0.0, %v512
        %v514 = vpop.f32.mrb[0].mxu0
        %v515 = vadd.f32 0.0, %v514
        %v516 = vpop.f32.mrb[0].mxu0
        %v517 = vadd.f32 0.0, %v516
        %518 = vmatprep.mubr.bf16.mxu0 %v247
        %519 = vmatmul.mubr.bf16.gmra.mrb[0].mxu0 %v246
        %v520 = vpop.f32.mrb[0].mxu0
        %v521 = vadd.f32 0.0, %v520
        %v522 = vpop.f32.mrb[0].mxu0
        %v523 = vadd.f32 0.0, %v522
        %v524 = vpop.f32.mrb[0].mxu0
        %v525 = vadd.f32 0.0, %v524
        %v526 = vpop.f32.mrb[0].mxu0
        %v527 = vadd.f32 0.0, %v526
        %528 = vmatprep.mubr.bf16.mxu0 %v249
        %529 = vmatmul.mubr.bf16.gmra.mrb[0].mxu0 %v248
        %v530 = vpop.f32.mrb[0].mxu0
        %v531 = vadd.f32 0.0, %v530
        %v532 = vpop.f32.mrb[0].mxu0
        %v533 = vadd.f32 0.0, %v532
        %v534 = vpop.f32.mrb[0].mxu0
        %v535 = vadd.f32 0.0, %v534
        %v536 = vpop.f32.mrb[0].mxu0
        %v537 = vadd.f32 0.0, %v536
        %538 = vmatprep.mubr.bf16.mxu0 %v251
        %539 = vmatmul.mubr.bf16.gmra.mrb[0].mxu0 %v250
        %v540 = vpop.f32.mrb[0].mxu0
        %v541 = vadd.f32 0.0, %v540
        %v542 = vpop.f32.mrb[0].mxu0
        %v543 = vadd.f32 0.0, %v542
        %v544 = vpop.f32.mrb[0].mxu0
        %v545 = vadd.f32 0.0, %v544
        %v546 = vpop.f32.mrb[0].mxu0
        %v547 = vadd.f32 0.0, %v546
        %548 = vmatprep.mubr.bf16.mxu0 %v253
        %549 = vmatmul.mubr.bf16.gmra.mrb[0].mxu0 %v252
        %v550 = vpop.f32.mrb[0].mxu0
        %v551 = vadd.f32 0.0, %v550
        %v552 = vpop.f32.mrb[0].mxu0
        %v553 = vadd.f32 0.0, %v552
        %v554 = vpop.f32.mrb[0].mxu0
        %v555 = vadd.f32 0.0, %v554
        %v556 = vpop.f32.mrb[0].mxu0
        %v557 = vadd.f32 0.0, %v556
        %558 = vdwg.mxu0
        %v559 = vtanh.pop %v481
        %v560 = vtanh.pop %v483
        %v561 = vtanh.pop %v485
        %v562 = vtanh.pop %v487
        %v563 = vtanh.pop %v491
        %v564 = vtanh.pop %v493
        %v565 = vtanh.pop %v495
        %v566 = vtanh.pop %v497
        %v567 = vtanh.pop %v501
        %v568 = vtanh.pop %v503
        %v569 = vtanh.pop %v505
        %v570 = vtanh.pop %v507
        %v571 = vtanh.pop %v511
        %v572 = vtanh.pop %v513
        %v573 = vtanh.pop %v515
        %v574 = vtanh.pop %v517
        %v575 = vtanh.pop %v521
        %v576 = vtanh.pop %v523
        %v577 = vtanh.pop %v525
        %v578 = vtanh.pop %v527
        %v579 = vtanh.pop %v531
        %v580 = vtanh.pop %v533
        %v581 = vtanh.pop %v535
        %v582 = vtanh.pop %v537
        %v583 = vtanh.pop %v541
        %v584 = vtanh.pop %v543
        %v585 = vtanh.pop %v545
        %v586 = vtanh.pop %v547
        %v587 = vtanh.pop %v551
        %v588 = vtanh.pop %v553
        %v589 = vtanh.pop %v555
        %v590 = vtanh.pop %v557
        %v591 = vld [vmem:[%s2] sm:$0x3]
        %v593 = vlaneseq
        %v594 = vshrl.u32 %v593, 7
        %v595 = vsub.s32 0, %v594
        %v596 = vrot.slane %v591, %v595
        %v597 = vlaneseq
        %v598 = vshrl.u32 %v597, 7
        %v599 = vsub.s32 1, %v598
        %v600 = vrot.slane %v591, %v599
        %v603 = vmul.f32 %v559, %v596
        %v604 = vmul.f32 %v560, %v600
        %v605 = vmul.f32 %v561, %v596
        %v606 = vmul.f32 %v562, %v600
        %v607 = vmul.f32 %v563, %v596
        %v608 = vmul.f32 %v564, %v600
        %v609 = vmul.f32 %v565, %v596
        %v610 = vmul.f32 %v566, %v600
        %v611 = vmul.f32 %v567, %v596
        %v612 = vmul.f32 %v568, %v600
        %v613 = vmul.f32 %v569, %v596
        %v614 = vmul.f32 %v570, %v600
        %v615 = vmul.f32 %v571, %v596
        %v616 = vmul.f32 %v572, %v600
        %v617 = vmul.f32 %v573, %v596
        %v618 = vmul.f32 %v574, %v600
        %v619 = vmul.f32 %v575, %v596
        %v620 = vmul.f32 %v576, %v600
        %v621 = vmul.f32 %v577, %v596
        %v622 = vmul.f32 %v578, %v600
        %v623 = vmul.f32 %v579, %v596
        %v624 = vmul.f32 %v580, %v600
        %v625 = vmul.f32 %v581, %v596
        %v626 = vmul.f32 %v582, %v600
        %v627 = vmul.f32 %v583, %v596
        %v628 = vmul.f32 %v584, %v600
        %v629 = vmul.f32 %v585, %v596
        %v630 = vmul.f32 %v586, %v600
        %v631 = vmul.f32 %v587, %v596
        %v632 = vmul.f32 %v588, %v600
        %v633 = vmul.f32 %v589, %v596
        %v634 = vmul.f32 %v590, %v600
        %v635 = vadd.f32 %v603, %v604
        %636 = vadd.xlane.f32.xlu0 %v635
        %v637 = vpop.xlane.xlu0 %636
        %v638 = vadd.f32 %v605, %v606
        %639 = vadd.xlane.f32.xlu0 %v638
        %v640 = vpop.xlane.xlu0 %639
        %v641 = vadd.f32 %v607, %v608
        %642 = vadd.xlane.f32.xlu0 %v641
        %v643 = vpop.xlane.xlu0 %642
        %v644 = vadd.f32 %v609, %v610
        %645 = vadd.xlane.f32.xlu0 %v644
        %v646 = vpop.xlane.xlu0 %645
        %v647 = vadd.f32 %v611, %v612
        %648 = vadd.xlane.f32.xlu0 %v647
        %v649 = vpop.xlane.xlu0 %648
        %v650 = vadd.f32 %v613, %v614
        %651 = vadd.xlane.f32.xlu0 %v650
        %v652 = vpop.xlane.xlu0 %651
        %v653 = vadd.f32 %v615, %v616
        %654 = vadd.xlane.f32.xlu0 %v653
        %v655 = vpop.xlane.xlu0 %654
        %v656 = vadd.f32 %v617, %v618
        %657 = vadd.xlane.f32.xlu0 %v656
        %v658 = vpop.xlane.xlu0 %657
        %v659 = vadd.f32 %v619, %v620
        %660 = vadd.xlane.f32.xlu0 %v659
        %v661 = vpop.xlane.xlu0 %660
        %v662 = vadd.f32 %v621, %v622
        %663 = vadd.xlane.f32.xlu0 %v662
        %v664 = vpop.xlane.xlu0 %663
        %v665 = vadd.f32 %v623, %v624
        %666 = vadd.xlane.f32.xlu0 %v665
        %v667 = vpop.xlane.xlu0 %666
        %v668 = vadd.f32 %v625, %v626
        %669 = vadd.xlane.f32.xlu0 %v668
        %v670 = vpop.xlane.xlu0 %669
        %v671 = vadd.f32 %v627, %v628
        %672 = vadd.xlane.f32.xlu0 %v671
        %v673 = vpop.xlane.xlu0 %672
        %v674 = vadd.f32 %v629, %v630
        %675 = vadd.xlane.f32.xlu0 %v674
        %v676 = vpop.xlane.xlu0 %675
        %v677 = vadd.f32 %v631, %v632
        %678 = vadd.xlane.f32.xlu0 %v677
        %v679 = vpop.xlane.xlu0 %678
        %v680 = vadd.f32 %v633, %v634
        %681 = vadd.xlane.f32.xlu0 %v680
        %v682 = vpop.xlane.xlu0 %681
        %v683 = vmax.f32 %v637, %v649
        %v684 = vmax.f32 %v640, %v652
        %v685 = vmax.f32 %v643, %v655
        %v686 = vmax.f32 %v646, %v658
        %v687 = vmax.f32 %v683, %v661
        %v688 = vmax.f32 %v684, %v664
        %v689 = vmax.f32 %v685, %v667
        %v690 = vmax.f32 %v686, %v670
        %v691 = vmax.f32 %v687, %v673
        %v692 = vmax.f32 %v688, %v676
        %v693 = vmax.f32 %v689, %v679
        %v694 = vmax.f32 %v690, %v682
        %v695 = vmax.f32 %v691, %v692
        %v696 = vmax.f32 %v693, %v694
        %v697 = vmax.f32 %v695, %v696
        %v698 = vrot.slane %v697, 4
        %v699 = vmax.f32 %v697, %v698
        %v700 = vrot.slane %v699, 2
        %v701 = vmax.f32 %v699, %v700
        %v702 = vrot.slane %v701, 1
        %v703 = vmax.f32 %v701, %v702
        %v704 = vsub.f32 %v637, %v703
        %v705 = vsub.f32 %v640, %v703
        %v706 = vsub.f32 %v643, %v703
        %v707 = vsub.f32 %v646, %v703
        %v708 = vsub.f32 %v649, %v703
        %v709 = vsub.f32 %v652, %v703
        %v710 = vsub.f32 %v655, %v703
        %v711 = vsub.f32 %v658, %v703
        %v712 = vsub.f32 %v661, %v703
        %v713 = vsub.f32 %v664, %v703
        %v714 = vsub.f32 %v667, %v703
        %v715 = vsub.f32 %v670, %v703
        %v716 = vsub.f32 %v673, %v703
        %v717 = vsub.f32 %v676, %v703
        %v718 = vsub.f32 %v679, %v703
        %v719 = vsub.f32 %v682, %v703
        %v720 = vmul.f32 %v704, 1.442695
        %v721 = vpow.pop %v720
        %v722 = vmul.f32 %v705, 1.442695
        %v723 = vpow.pop %v722
        %v724 = vmul.f32 %v706, 1.442695
        %v725 = vpow.pop %v724
        %v726 = vmul.f32 %v707, 1.442695
        %v727 = vpow.pop %v726
        %v728 = vmul.f32 %v708, 1.442695
        %v729 = vpow.pop %v728
        %v730 = vmul.f32 %v709, 1.442695
        %v731 = vpow.pop %v730
        %v732 = vmul.f32 %v710, 1.442695
        %v733 = vpow.pop %v732
        %v734 = vmul.f32 %v711, 1.442695
        %v735 = vpow.pop %v734
        %v736 = vmul.f32 %v712, 1.442695
        %v737 = vpow.pop %v736
        %v738 = vmul.f32 %v713, 1.442695
        %v739 = vpow.pop %v738
        %v740 = vmul.f32 %v714, 1.442695
        %v741 = vpow.pop %v740
        %v742 = vmul.f32 %v715, 1.442695
        %v743 = vpow.pop %v742
        %v744 = vmul.f32 %v716, 1.442695
        %v745 = vpow.pop %v744
        %v746 = vmul.f32 %v717, 1.442695
        %v747 = vpow.pop %v746
        %v748 = vmul.f32 %v718, 1.442695
        %v749 = vpow.pop %v748
        %v750 = vmul.f32 %v719, 1.442695
        %v751 = vpow.pop %v750
        %v752 = vlaneseq
        %v753 = vshrl.u32 %v752, 7
        %v754 = vlaneseq
        %v755 = vand.u32 %v754, 127
        %v756 = vmul.u32 %v753, 16
        %vm757 = vcmp.ge.s32.totalorder %v755, %v756
        %v758 = vadd.s32 %v756, 16
        %vm759 = vcmp.lt.s32.totalorder %v755, %v758
        %vm760 = vmand %vm757, %vm759
        %v761 = vsel %vm760, 1.0, 0.0
        %v762 = vmul.f32 %v721, %v206
        %v763 = vmul.f32 %v721, %v207
        %v764 = vmul.f32 %v723, %v208
        %v765 = vmul.f32 %v723, %v209
        %v766 = vmul.f32 %v725, %v210
        %v767 = vmul.f32 %v725, %v211
        %v768 = vmul.f32 %v727, %v212
        %v769 = vmul.f32 %v727, %v213
        %v770 = vmul.f32 %v729, %v214
        %v771 = vmul.f32 %v729, %v215
        %v772 = vmul.f32 %v731, %v216
        %v773 = vmul.f32 %v731, %v217
        %v774 = vmul.f32 %v733, %v218
        %v775 = vmul.f32 %v733, %v219
        %v776 = vmul.f32 %v735, %v220
        %v777 = vmul.f32 %v735, %v221
        %v778 = vmul.f32 %v737, %v222
        %v779 = vmul.f32 %v737, %v223
        %v780 = vmul.f32 %v739, %v224
        %v781 = vmul.f32 %v739, %v225
        %v782 = vmul.f32 %v741, %v226
        %v783 = vmul.f32 %v741, %v227
        %v784 = vmul.f32 %v743, %v228
        %v785 = vmul.f32 %v743, %v229
        %v786 = vmul.f32 %v745, %v230
        %v787 = vmul.f32 %v745, %v231
        %v788 = vmul.f32 %v747, %v232
        %v789 = vmul.f32 %v747, %v233
        %v790 = vmul.f32 %v749, %v234
        %v791 = vmul.f32 %v749, %v235
        %v792 = vmul.f32 %v751, %v236
        %v793 = vmul.f32 %v751, %v237
        %794 = vmatprep.subr.mxu0 %v763
        %795 = vmatpush1.msra.mxu0 %v762
        %796 = vmatprep.subr.mxu0 %v765
        %797 = vmatpush1.msra.mxu0 %v764
        %798 = vmatprep.subr.mxu0 %v767
        %799 = vmatpush1.msra.mxu0 %v766
        %800 = vmatprep.subr.mxu0 %v769
        %801 = vmatpush1.msra.mxu0 %v768
        %802 = vmatprep.subr.mxu0 %v771
        %803 = vmatpush1.msra.mxu0 %v770
        %804 = vmatprep.subr.mxu0 %v773
        %805 = vmatpush1.msra.mxu0 %v772
        %806 = vmatprep.subr.mxu0 %v775
        %807 = vmatpush1.msra.mxu0 %v774
        %808 = vmatprep.subr.mxu0 %v777
        %809 = vmatpush1.msra.mxu0 %v776
        %810 = vmatprep.subr.mxu0 %v779
        %811 = vmatpush1.msra.mxu0 %v778
        %812 = vmatprep.subr.mxu0 %v781
        %813 = vmatpush1.msra.mxu0 %v780
        %814 = vmatprep.subr.mxu0 %v783
        %815 = vmatpush1.msra.mxu0 %v782
        %816 = vmatprep.subr.mxu0 %v785
        %817 = vmatpush1.msra.mxu0 %v784
        %818 = vmatprep.subr.mxu0 %v787
        %819 = vmatpush1.msra.mxu0 %v786
        %820 = vmatprep.subr.mxu0 %v789
        %821 = vmatpush1.msra.mxu0 %v788
        %822 = vmatprep.subr.mxu0 %v791
        %823 = vmatpush1.msra.mxu0 %v790
        %824 = vmatprep.subr.mxu0 %v793
        %825 = vmatpush1.msra.mxu0 %v792
        %826 = vmatprep.subr.mxu0 0.0
        %827 = vmatpush1.msra.mxu0 0.0
        %828 = vmatprep.subr.mxu0 0.0
        %829 = vmatpush1.msra.mxu0 0.0
        %830 = vmatprep.subr.mxu0 0.0
        %831 = vmatpush1.msra.mxu0 0.0
        %832 = vmatprep.subr.mxu0 0.0
        %833 = vmatpush1.msra.mxu0 0.0
        %834 = vmatprep.subr.mxu0 0.0
        %835 = vmatpush1.msra.mxu0 0.0
        %836 = vmatprep.subr.mxu0 0.0
        %837 = vmatpush1.msra.mxu0 0.0
        %838 = vmatprep.subr.mxu0 0.0
        %839 = vmatpush1.msra.mxu0 0.0
        %840 = vmatprep.subr.mxu0 0.0
        %841 = vmatpush1.msra.mxu0 0.0
        %842 = vmatprep.subr.mxu0 0.0
        %843 = vmatpush1.msra.mxu0 0.0
        %844 = vmatprep.subr.mxu0 0.0
        %845 = vmatpush1.msra.mxu0 0.0
        %846 = vmatprep.subr.mxu0 0.0
        %847 = vmatpush1.msra.mxu0 0.0
        %848 = vmatprep.subr.mxu0 0.0
        %849 = vmatpush1.msra.mxu0 0.0
        %850 = vmatprep.subr.mxu0 0.0
        %851 = vmatpush1.msra.mxu0 0.0
        %852 = vmatprep.subr.mxu0 0.0
        %853 = vmatpush1.msra.mxu0 0.0
        %854 = vmatprep.subr.mxu0 0.0
        %855 = vmatpush1.msra.mxu0 0.0
        %856 = vmatprep.subr.mxu0 0.0
        %857 = vmatpush1.msra.mxu0 0.0
        %858 = vmatprep.mubr.f32.mxu0 0.0
        %859 = vmatmul.mubr.f32.gmra.mrb[0].mxu0 %v761
        %v860 = vpop.f32.mrb[0].mxu0
        %v861 = vadd.f32 0.0, %v860
        %v862 = vpop.f32.mrb[0].mxu0
        %v863 = vadd.f32 0.0, %v862
        %864 = vdwg.mxu0
        %865 = vmatprep.subr.mxu0 0.0
        %866 = vmatpush1.msra.mxu0 %v721
        %867 = vmatprep.subr.mxu0 0.0
        %868 = vmatpush1.msra.mxu0 %v723
        %869 = vmatprep.subr.mxu0 0.0
        %870 = vmatpush1.msra.mxu0 %v725
        %871 = vmatprep.subr.mxu0 0.0
        %872 = vmatpush1.msra.mxu0 %v727
        %873 = vmatprep.subr.mxu0 0.0
        %874 = vmatpush1.msra.mxu0 %v729
        %875 = vmatprep.subr.mxu0 0.0
        %876 = vmatpush1.msra.mxu0 %v731
        %877 = vmatprep.subr.mxu0 0.0
        %878 = vmatpush1.msra.mxu0 %v733
        %879 = vmatprep.subr.mxu0 0.0
        %880 = vmatpush1.msra.mxu0 %v735
        %881 = vmatprep.subr.mxu0 0.0
        %882 = vmatpush1.msra.mxu0 %v737
        %883 = vmatprep.subr.mxu0 0.0
        %884 = vmatpush1.msra.mxu0 %v739
        %885 = vmatprep.subr.mxu0 0.0
        %886 = vmatpush1.msra.mxu0 %v741
        %887 = vmatprep.subr.mxu0 0.0
        %888 = vmatpush1.msra.mxu0 %v743
        %889 = vmatprep.subr.mxu0 0.0
        %890 = vmatpush1.msra.mxu0 %v745
        %891 = vmatprep.subr.mxu0 0.0
        %892 = vmatpush1.msra.mxu0 %v747
        %893 = vmatprep.subr.mxu0 0.0
        %894 = vmatpush1.msra.mxu0 %v749
        %895 = vmatprep.subr.mxu0 0.0
        %896 = vmatpush1.msra.mxu0 %v751
        %897 = vmatprep.subr.mxu0 0.0
        %898 = vmatpush1.msra.mxu0 0.0
        %899 = vmatprep.subr.mxu0 0.0
        %900 = vmatpush1.msra.mxu0 0.0
        %901 = vmatprep.subr.mxu0 0.0
        %902 = vmatpush1.msra.mxu0 0.0
        %903 = vmatprep.subr.mxu0 0.0
        %904 = vmatpush1.msra.mxu0 0.0
        %905 = vmatprep.subr.mxu0 0.0
        %906 = vmatpush1.msra.mxu0 0.0
        %907 = vmatprep.subr.mxu0 0.0
        %908 = vmatpush1.msra.mxu0 0.0
        %909 = vmatprep.subr.mxu0 0.0
        %910 = vmatpush1.msra.mxu0 0.0
        %911 = vmatprep.subr.mxu0 0.0
        %912 = vmatpush1.msra.mxu0 0.0
        %913 = vmatprep.subr.mxu0 0.0
        %914 = vmatpush1.msra.mxu0 0.0
        %915 = vmatprep.subr.mxu0 0.0
        %916 = vmatpush1.msra.mxu0 0.0
        %917 = vmatprep.subr.mxu0 0.0
        %918 = vmatpush1.msra.mxu0 0.0
        %919 = vmatprep.subr.mxu0 0.0
        %920 = vmatpush1.msra.mxu0 0.0
        %921 = vmatprep.subr.mxu0 0.0
        %922 = vmatpush1.msra.mxu0 0.0
        %923 = vmatprep.subr.mxu0 0.0
        %924 = vmatpush1.msra.mxu0 0.0
        %925 = vmatprep.subr.mxu0 0.0
        %926 = vmatpush1.msra.mxu0 0.0
        %927 = vmatprep.subr.mxu0 0.0
        %928 = vmatpush1.msra.mxu0 0.0
        %929 = vmatprep.mubr.f32.mxu0 0.0
        %930 = vmatmul.mubr.f32.gmra.mrb[0].mxu0 %v761
        %v931 = vpop.f32.mrb[0].mxu0
        %v932 = vadd.f32 0.0, %v931
        %v933 = vpop.f32.mrb[0].mxu0
        %934 = vdwg.mxu0
        %936 = vset.pattern.permute.xlu0 0
        %937 = vperm.xlu0 %936, %v932
        %v938 = vpop.permute.xlu0 %937
        %v940 = vrcp.pop %v938
        %v941 = vmul.f32 %v861, %v940
        %v942 = vmul.f32 %v863, %v940
        %943 = vst [vmem:[%s204] sm:$0xff] %v941
        %944 = vst [vmem:[%s204 + $0x8] sm:$0xff] %v942
        %s945 = sand.u32 %s97, 1
        %s946 = scalar_lea.sflag [#allocation4], %s945
        %s947 = sand.u32 %s97, 1
        %s948 = smul.addr %s947, 16
        %s949 = scalar_lea.vmem [#allocation7], %s948
        // Predicated region
        $region41: #{tpu_custom_call.1} parent=31 // pred_check
          %p950 = pneg %p107
        $region42: #{tpu_custom_call.1} parent=31 // pred_check_branch
          %952 = sbr.rel (%p950) target = $region44
        $region43: #{tpu_custom_call.1} parent=31 // pred_region
          %s954 = ssub.s32 256, 256
          %955 = vsyncadd %s946, %s954
          %s956 = smul.addr %s21, 2
          %s957 = smul.addr %s956, 128
          %s958 = scalar_lea.hbm %s3, %s957
          %s960 = sshll.u32 %s949, 4
          %s961 = int_to_ptr.vmem [resolvable:$true] %s960
          %963 = dma.vmem_to_hbm [thread:$0]  %s961, 256, %s958, %s946
        $region44: #{tpu_custom_call.1} parent=31 // pred_fallthru
          _
      $region32: #{tpu_custom_call.1} parent=5 // pred_fallthru
        _
      %p964 = scmp.le.s32.totalorder 2, %s16
      // Predicated region
      $region45: #{tpu_custom_call.1} parent=5 // pred_check
        %p965 = pneg %p964
      $region46: #{tpu_custom_call.1} parent=5 // pred_check_branch
        %967 = sbr.rel (%p965) target = $region48
      $region47: #{tpu_custom_call.1} parent=5 // pred_region
        %s968 = ssub.s32 %s16, 2
        // Predicated region
        $region49: #{tpu_custom_call.1} parent=47 // pred_check
          %p969 = pneg %p113
        $region50: #{tpu_custom_call.1} parent=47 // pred_check_branch
          %971 = sbr.rel (%p969) target = $region52
        $region51: #{tpu_custom_call.1} parent=47 // pred_region
          %s972 = sand.u32 %s98, 1
          %s973 = scalar_lea.sflag [#allocation4], %s972
          %s974 = sand.u32 %s98, 1
          %s975 = smul.addr %s974, 16
          %s976 = scalar_lea.vmem [#allocation7], %s975
          %977 = dma.done %s973, 256
        $region52: #{tpu_custom_call.1} parent=47 // pred_fallthru
          _
      $region48: #{tpu_custom_call.1} parent=5 // pred_fallthru
        _
    $region6: #{tpu_custom_call.1} parent=1 // loop_footer
      %s20 = sadd.s32 1, %s16
    $region7: #{tpu_custom_call.1} parent=1 // loop_footer_branch
      %15 = sbr.rel target = $region3
    $region8: #{tpu_custom_call.1} parent=1 // loop_exit
      _
    %978 = vsyncpa [#allocation3], 1
    %s979 = scalar_lea.sflag [#allocation3], 1
    %980 = vsyncpa %s979, 1
    %981 = vsyncpa [#allocation6], 1
    %982 = vsyncpa [#allocation4], 1
    %s983 = scalar_lea.sflag [#allocation4], 1
    %984 = vsyncpa %s983, 1

</llo_original>
